<compile_context>
chip_gen: v7x
topology: tpu7x:2x2x1
jax: 0.10.0
libtpu: 0.0.40
codegen_flags: <defaults>
</compile_context>

<pallas_src>
import jax
import jax.numpy as jnp
from jax.experimental import pallas as pl
from jax.experimental.pallas import tpu as pltpu


def _cdiv(a, b):
    return -(-a // b)


def xe_kernel(lengths_ref, pred_ref, target_ref, weights_ref, loss_ref):
    b = pl.program_id(0)
    ti = pl.program_id(1)
    vi = pl.program_id(2)

    tt = pred_ref.shape[1]
    vt = pred_ref.shape[2]

    pred = pred_ref[0].astype(jnp.float32)   # (Tt, Vt) log-probs, upcast on load
    tgt = target_ref[0]                      # (Tt, 1)  int32
    w = weights_ref[0].astype(jnp.float32)   # (Tt, 1)

    # gather(pred, 2, target): one-hot compare of the loop-invariant lane iota
    # against the tile-local target id, then a lane reduction.  (No MXU.)
    lane = jax.lax.broadcasted_iota(jnp.int32, (tt, vt), 1)
    local_tgt = tgt - vi * vt                # (Tt, 1)
    hit = lane == local_tgt                  # (Tt, Vt); never true for vocab ids >= V
    gathered = jnp.sum(jnp.where(hit, pred, 0.0), axis=1, keepdims=True)

    # mask as a *select*: robust to -inf log-probs on masked timesteps and to
    # unspecified OOB contents of the ragged last T tile (t >= T >= lengths[b]).
    t_ids = ti * tt + jax.lax.broadcasted_iota(jnp.int32, (tt, 1), 0)
    valid = t_ids < lengths_ref[b]
    contrib = jnp.where(valid, -gathered * w, 0.0)   # (Tt, 1)

    @pl.when(vi == 0)
    def _init():
        loss_ref[...] = jnp.zeros_like(loss_ref)

    # accumulate into the resident output block across the vocab reduction
    loss_ref[0] += contrib


def xe_criterion(pred, target, lengths, weights, *, t_tile=None, v_tile=None,
                 max_tile_bytes=8 * 1024 * 1024):
    """pred: (B, T, V) log-probs (f32 or bf16); target: (B, T) int;
    lengths: (B,) int; weights: (B, T) float.
    Returns sum(-gathered * mask * weights) / sum(mask)."""
    B, T, V = pred.shape
    itemsize = jnp.dtype(pred.dtype).itemsize

    # ---- tile selection (no padding of pred; ragged edges handled in-kernel)
    if v_tile is None:
        if max_tile_bytes // (itemsize * V) >= 8:
            v_tile = V                      # full vocab per tile: single V step
        else:
            v_tile = 2048                   # 128-aligned; ragged V edge masked
    if t_tile is None:
        t_cap = max(8, (max_tile_bytes // (itemsize * v_tile)) // 8 * 8)
        if T <= 8 or (T <= t_cap and T % 8 == 0):
            t_tile = T
        else:
            t_tile = min(t_cap, max(8, (T // 8) * 8))
        # v7x megacore: keep >= 2 parallel grid steps so both TCs drive HBM
        while B * _cdiv(T, t_tile) < 2 and t_tile > 8:
            t_tile = max(8, ((t_tile // 2) + 7) // 8 * 8)
    assert v_tile == V or v_tile % 128 == 0
    assert t_tile == T or t_tile % 8 == 0

    lengths = jnp.minimum(jnp.asarray(lengths, jnp.int32), T)
    target3 = target.astype(jnp.int32)[..., None]      # (B, T, 1) -- tiny copy
    weights3 = weights[..., None]                       # (B, T, 1)

    grid = (B, _cdiv(T, t_tile), _cdiv(V, v_tile))

    grid_spec = pltpu.PrefetchScalarGridSpec(
        num_scalar_prefetch=1,
        grid=grid,
        in_specs=[
            # pred: streamed in producer dtype, tiled over (b, t-tile, v-tile)
            pl.BlockSpec((1, t_tile, v_tile),
                         lambda b, ti, vi, lens: (b, ti, vi)),
            # target / weights: resident across the vocab reduction
            pl.BlockSpec((1, t_tile, 1), lambda b, ti, vi, lens: (b, ti, 0)),
            pl.BlockSpec((1, t_tile, 1), lambda b, ti, vi, lens: (b, ti, 0)),
        ],
        out_specs=pl.BlockSpec((1, t_tile, 1), lambda b, ti, vi, lens: (b, ti, 0)),
    )

    cost = pl.CostEstimate(
        flops=3 * B * T * V,
        transcendentals=0,
        bytes_accessed=itemsize * B * T * V + 3 * 4 * B * T + 4 * B,
    )

    loss_per_t = pl.pallas_call(
        xe_kernel,
        out_shape=jax.ShapeDtypeStruct((B, T, 1), jnp.float32),
        grid_spec=grid_spec,
        compiler_params=pltpu.CompilerParams(
            dimension_semantics=("parallel", "parallel", "arbitrary"),
            vmem_limit_bytes=48 * 1024 * 1024,
        ),
        cost_estimate=cost,
    )(lengths, pred, target3, weights3)

    # denominator: sum(mask) == sum(min(lengths, T)); tiny wrapper-side reduce.
    # (No divide-by-zero guard, matching PyTorch.)
    denom = jnp.sum(lengths).astype(jnp.float32)
    return jnp.sum(loss_per_t) / denom


def xe_criterion_ref(pred, target, lengths, weights):
    B, T, _ = pred.shape
    predf = pred.astype(jnp.float32)
    gathered = jnp.take_along_axis(
        predf, target[..., None].astype(jnp.int32), axis=2)[..., 0]
    t_ids = jnp.arange(T)[None, :]
    mask = (t_ids < jnp.asarray(lengths)[:, None]).astype(jnp.float32)
    loss = -gathered * mask * weights.astype(jnp.float32)
    return jnp.sum(loss) / jnp.sum(mask)


if __name__ == "__main__":
    key = jax.random.PRNGKey(0)

    # Case 1: small captioning-decoder-like shapes (B=2, T=8, V=32).
    B, T, V = 2, 8, 32
    k1, k2, k3 = jax.random.split(key, 3)
    pred = jax.nn.log_softmax(
        jax.random.normal(k1, (B, T, V), dtype=jnp.float32), axis=-1)
    target = jax.random.randint(k2, (B, T), 0, V, dtype=jnp.int32)
    weights = jax.random.uniform(k3, (B, T), dtype=jnp.float32) + 0.5
    lengths = jnp.array([T, 5], dtype=jnp.int32)

    out = xe_criterion(pred, target, lengths, weights)
    jax.block_until_ready(out)
    ref = xe_criterion_ref(pred, target, lengths, weights)
    assert jnp.allclose(out, ref, rtol=1e-5, atol=1e-5), (out, ref)

    # Case 2: ragged T and V tile edges + multi-step vocab reduction (forced tiles).
    B2, T2, V2 = 2, 20, 300
    k4, k5, k6 = jax.random.split(jax.random.PRNGKey(1), 3)
    pred2 = jax.nn.log_softmax(
        jax.random.normal(k4, (B2, T2, V2), dtype=jnp.float32), axis=-1)
    target2 = jax.random.randint(k5, (B2, T2), 0, V2, dtype=jnp.int32)
    weights2 = jax.random.uniform(k6, (B2, T2), dtype=jnp.float32) + 0.5
    lengths2 = jnp.array([T2, 13], dtype=jnp.int32)

    out2 = xe_criterion(pred2, target2, lengths2, weights2, t_tile=8, v_tile=128)
    jax.block_until_ready(out2)
    ref2 = xe_criterion_ref(pred2, target2, lengths2, weights2)
    assert jnp.allclose(out2, ref2, rtol=1e-5, atol=1e-5), (out2, ref2)

    # Case 3: bf16 log-probs streamed in producer dtype (no wrapper cast/copy).
    B3, T3, V3 = 2, 16, 256
    k7, k8, k9 = jax.random.split(jax.random.PRNGKey(2), 3)
    pred3 = jax.nn.log_softmax(
        jax.random.normal(k7, (B3, T3, V3), dtype=jnp.float32), axis=-1
    ).astype(jnp.bfloat16)
    target3 = jax.random.randint(k8, (B3, T3), 0, V3, dtype=jnp.int32)
    weights3 = jax.random.uniform(k9, (B3, T3), dtype=jnp.float32) + 0.5
    lengths3 = jnp.array([16, 11], dtype=jnp.int32)

    out3 = xe_criterion(pred3, target3, lengths3, weights3)
    jax.block_until_ready(out3)
    ref3 = xe_criterion_ref(pred3, target3, lengths3, weights3)
    assert jnp.allclose(out3, ref3, rtol=1e-4, atol=1e-4), (out3, ref3)

    print("KERNEL_OK")
</pallas_src>

<mosaic_0001>
module attributes {stable_mosaic.version = 11 : i64} {
  func.func @xe_kernel(%arg0: i32, %arg1: i32, %arg2: i32, %arg3: memref<2xi32, #tpu.memory_space<smem>>, %arg4: memref<1x8x32xf32, #tpu.memory_space<vmem>>, %arg5: memref<1x8x1xi32, #tpu.memory_space<vmem>>, %arg6: memref<1x8x1xf32, #tpu.memory_space<vmem>>, %arg7: memref<1x8x1xf32, #tpu.memory_space<vmem>>) attributes {dimension_semantics = [#tpu.dimension_semantics<parallel>, #tpu.dimension_semantics<parallel>, #tpu.dimension_semantics<arbitrary>], iteration_bounds = array<i64: 2, 1, 1>, scalar_prefetch = 1 : i64, scratch_operands = 0 : i64, tpu.core_type = #tpu.core_type<tc>, window_params = [{transform_indices = @transform_0, window_bounds = array<i64: 1, 8, 32>}, {transform_indices = @transform_1, window_bounds = array<i64: 1, 8, 1>}, {transform_indices = @transform_2, window_bounds = array<i64: 1, 8, 1>}, {transform_indices = @transform_3, window_bounds = array<i64: 1, 8, 1>}]} {
    %c0 = arith.constant 0 : index
    %c0_0 = arith.constant 0 : index
    %c0_1 = arith.constant 0 : index
    %0 = vector.load %arg4[%c0, %c0_0, %c0_1] : memref<1x8x32xf32, #tpu.memory_space<vmem>>, vector<1x8x32xf32>
    %1 = vector.shape_cast %0 : vector<1x8x32xf32> to vector<8x32xf32>
    %c0_2 = arith.constant 0 : index
    %c0_3 = arith.constant 0 : index
    %c0_4 = arith.constant 0 : index
    %2 = vector.load %arg5[%c0_2, %c0_3, %c0_4] : memref<1x8x1xi32, #tpu.memory_space<vmem>>, vector<1x8x1xi32>
    %3 = vector.shape_cast %2 : vector<1x8x1xi32> to vector<8x1xi32>
    %c0_5 = arith.constant 0 : index
    %c0_6 = arith.constant 0 : index
    %c0_7 = arith.constant 0 : index
    %4 = vector.load %arg6[%c0_5, %c0_6, %c0_7] : memref<1x8x1xf32, #tpu.memory_space<vmem>>, vector<1x8x1xf32>
    %5 = vector.shape_cast %4 : vector<1x8x1xf32> to vector<8x1xf32>
    %6 = tpu.iota {dimensions = array<i32: 1>} : vector<8x32xi32>
    %c32_i32 = arith.constant 32 : i32
    %7 = arith.muli %arg2, %c32_i32 : i32
    %8 = vector.broadcast %7 : i32 to vector<8x1xi32>
    %9 = arith.subi %3, %8 : vector<8x1xi32>
    %10 = vector.broadcast %9 : vector<8x1xi32> to vector<8x32xi32>
    %11 = arith.cmpi eq, %6, %10 : vector<8x32xi32>
    %cst = arith.constant 0.000000e+00 : f32
    %12 = vector.broadcast %cst : f32 to vector<8x32xf32>
    %13 = arith.select %11, %1, %12 : vector<8x32xi1>, vector<8x32xf32>
    %cst_8 = arith.constant dense<0.000000e+00> : vector<8xf32>
    %14 = vector.multi_reduction <add>, %13, %cst_8 [1] : vector<8x32xf32> to vector<8xf32>
    %15 = vector.shape_cast %14 : vector<8xf32> to vector<8x1xf32>
    %c8_i32 = arith.constant 8 : i32
    %16 = arith.muli %arg1, %c8_i32 : i32
    %17 = tpu.iota {dimensions = array<i32: 0>} : vector<8x1xi32>
    %18 = vector.broadcast %16 : i32 to vector<8x1xi32>
    %19 = arith.addi %18, %17 : vector<8x1xi32>
    %20 = arith.index_cast %arg0 : i32 to index
    %21 = memref.load %arg3[%20] : memref<2xi32, #tpu.memory_space<smem>>
    %22 = vector.broadcast %21 : i32 to vector<8x1xi32>
    %23 = arith.cmpi slt, %19, %22 : vector<8x1xi32>
    %cst_9 = arith.constant 0.000000e+00 : f32
    %24 = vector.broadcast %cst_9 : f32 to vector<8x1xf32>
    %25 = arith.subf %24, %15 : vector<8x1xf32>
    %26 = arith.mulf %25, %5 : vector<8x1xf32>
    %cst_10 = arith.constant 0.000000e+00 : f32
    %27 = vector.broadcast %cst_10 : f32 to vector<8x1xf32>
    %28 = arith.select %23, %26, %27 : vector<8x1xi1>, vector<8x1xf32>
    %c0_i32 = arith.constant 0 : i32
    %29 = arith.cmpi eq, %arg2, %c0_i32 : i32
    %30 = arith.extui %29 : i1 to i32
    %c0_i32_11 = arith.constant 0 : i32
    %31 = arith.cmpi ne, %30, %c0_i32_11 : i32
    scf.if %31 {
      %cst_18 = arith.constant 0.000000e+00 : f32
      %38 = vector.broadcast %cst_18 : f32 to vector<1x8x1xf32>
      %c0_19 = arith.constant 0 : index
      %c0_20 = arith.constant 0 : index
      %c0_21 = arith.constant 0 : index
      %39 = vector.load %arg7[%c0_19, %c0_20, %c0_21] : memref<1x8x1xf32, #tpu.memory_space<vmem>>, vector<1x8x1xf32>
      tpu.vector_store %arg7[%c0_19, %c0_20, %c0_21], %38 {strides = array<i32>} : memref<1x8x1xf32, #tpu.memory_space<vmem>>, vector<1x8x1xf32>,
    } else {
    }
    %c0_12 = arith.constant 0 : index
    %c0_13 = arith.constant 0 : index
    %c0_14 = arith.constant 0 : index
    %32 = vector.load %arg7[%c0_12, %c0_13, %c0_14] : memref<1x8x1xf32, #tpu.memory_space<vmem>>, vector<1x8x1xf32>
    %33 = vector.shape_cast %32 : vector<1x8x1xf32> to vector<8x1xf32>
    %34 = arith.addf %33, %28 : vector<8x1xf32>
    %c0_15 = arith.constant 0 : index
    %c0_16 = arith.constant 0 : index
    %c0_17 = arith.constant 0 : index
    %35 = vector.load %arg7[%c0_15, %c0_16, %c0_17] : memref<1x8x1xf32, #tpu.memory_space<vmem>>, vector<1x8x1xf32>
    %36 = vector.shape_cast %35 : vector<1x8x1xf32> to vector<8x1xf32>
    %37 = vector.shape_cast %34 : vector<8x1xf32> to vector<1x8x1xf32>
    tpu.vector_store %arg7[%c0_15, %c0_16, %c0_17], %37 {strides = array<i32>} : memref<1x8x1xf32, #tpu.memory_space<vmem>>, vector<1x8x1xf32>,
    return
  }
  func.func @transform_0(%arg0: i32, %arg1: i32, %arg2: i32, %arg3: memref<2xi32, #tpu.memory_space<smem>>) -> (i32, i32, i32) {
    %c0_i32 = arith.constant 0 : i32
    return %arg0, %arg1, %arg2 : i32, i32, i32
  }
  func.func @transform_1(%arg0: i32, %arg1: i32, %arg2: i32, %arg3: memref<2xi32, #tpu.memory_space<smem>>) -> (i32, i32, i32) {
    %c0_i32 = arith.constant 0 : i32
    %c0_i32_0 = arith.constant 0 : i32
    return %arg0, %arg1, %c0_i32 : i32, i32, i32
  }
  func.func @transform_2(%arg0: i32, %arg1: i32, %arg2: i32, %arg3: memref<2xi32, #tpu.memory_space<smem>>) -> (i32, i32, i32) {
    %c0_i32 = arith.constant 0 : i32
    %c0_i32_0 = arith.constant 0 : i32
    return %arg0, %arg1, %c0_i32 : i32, i32, i32
  }
  func.func @transform_3(%arg0: i32, %arg1: i32, %arg2: i32, %arg3: memref<2xi32, #tpu.memory_space<smem>>) -> (i32, i32, i32) {
    %c0_i32 = arith.constant 0 : i32
    %c0_i32_0 = arith.constant 0 : i32
    return %arg0, %arg1, %c0_i32 : i32, i32, i32
  }
}

</mosaic_0001>

<llo_original>
// kernel: tpu_custom_call.1
$region0: #{tpu_custom_call.1}
  #allocation0 [shape = 'u32[]', space=smem, size = 0x4, offset = 0x4, fixed_abs, tag = 'smem constant byte address 0x4 - core index']
  #allocation1 [shape = 'u32[144,128]{1,0:T(1,128)}', space=vmem, size = 0x12000, scoped, tag = 'internal scratch']
  #allocation2 [shape = 's32[1]{0}', space=sflag, size = 0x4, scoped, tag = 'scoped memory for tpu_custom_call.1']
  #allocation3 [shape = 'u8[512]{0}', space=smem, size = 0x200, scoped, tag = 'prefetched SMEM operand 0']
  %s0 = inlined_call_operand.vmem [shape: s32[2], index: 0, kind: input, shape index: {}]
  %s1 = inlined_call_operand.vmem [shape: f32[2,8,32], index: 1, kind: input, shape index: {}]
  %s2 = inlined_call_operand.vmem [shape: s32[2,8,1], index: 2, kind: input, shape index: {}]
  %s3 = inlined_call_operand.vmem [shape: f32[2,8,1], index: 3, kind: input, shape index: {}]
  %s4 = inlined_call_operand.vmem [shape: f32[2,8,1], index: 4, kind: output, shape index: {}]
  %s5 = sld [smem:[#allocation0]]
  $region49: #{tpu_custom_call.1} parent=0
    _
  %s7 = ssub.s32 1, %s5
  %s8 = scalar_select 0, %s7, %s5
  %s9 = sshll.u32 %s0, 4
  %s10 = int_to_ptr.vmem [resolvable:$true] %s9
  %12 = dma.vmem_to_smem %s10, 16, [#allocation3], [#allocation2]
  %13 = dma.done [#allocation2], 16
  %14 = sfence
  loop: start=0, step=1, limit=4
  $region2: #{tpu_custom_call.1} parent=0 // loop_pre_header
    _
  $region3: #{tpu_custom_call.1} parent=0 // loop_header
    %s16 = sphi 0, %s20
    %p17 = scmp.ge.s32.totalorder %s16, 4
    %s23 = sphi 0, %s42
    %s24 = sphi 0, %s38
    %s25 = sphi 0, %s34
    %s26 = sphi 0, %s23
    %s27 = sphi 0, %s24
    %s28 = sphi 0, %s25
    %s29 = sphi 0, %s26
    %s30 = sphi 0, %s27
    %s31 = sphi 0, %s28
    %s49 = sphi 0, %s51
    %s52 = sphi 0, %s49
    %s53 = sphi 0, %s52
    %s69 = sphi 0, %s53
    %s77 = sphi 0, %s79
    %s80 = sphi 0, %s77
    %s81 = sphi 0, %s80
    %s97 = sphi 0, %s81
    %s105 = sphi 0, %s107
    %s108 = sphi 0, %s105
    %s109 = sphi 0, %s108
    %s125 = sphi 0, %s109
    %s133 = sphi 0, %s135
    %s136 = sphi 0, %s133
    %s137 = sphi 0, %s136
    %s153 = sphi 0, %s137
  $region4: #{tpu_custom_call.1} parent=0 // loop_header_branch
    %19 = sbr.rel (%p17) target = $region8
  $region5: #{tpu_custom_call.1} parent=0 // loop_body
    %s21 = ssub.s32 %s16, 1
    %s22 = ssub.s32 %s16, 2
    %s32 = sadd.s32 1, %s25
    %p33 = scmp.ge.s32.totalorder %s32, 1
    %s34 = scalar_select %p33, 0, %s32
    %s35 = sadd.s32 1, %s24
    %s36 = scalar_select %p33, %s35, %s24
    %p37 = scmp.ge.s32.totalorder %s36, 1
    %s38 = scalar_select %p37, 0, %s36
    %s39 = sadd.s32 1, %s23
    %s40 = scalar_select %p37, %s39, %s23
    %p41 = scmp.ge.s32.totalorder %s40, 2
    %s42 = scalar_select %p41, 0, %s40
    %s43 = ssub.s32 %s23, %s42
    %s44 = ssub.s32 %s24, %s38
    %s45 = sor.u32 %s43, %s44
    %s46 = ssub.s32 %s25, %s34
    %s47 = sor.u32 %s45, %s46
    %p48 = scmp.eq.s32.totalorder %s47, 0
    %s50 = sadd.s32 %s49, 1
    %s51 = scalar_select %p48, %s49, %s50
    %p54 = pneg %p48
    %p55 = scmp.eq.s32.totalorder %s16, 1
    %p56 = por %p54, %p55
    %p57 = scmp.ne.s32.totalorder %s49, %s52
    %p58 = scmp.eq.s32.totalorder %s16, 0
    %p59 = por %p57, %p58
    %p60 = scmp.ne.s32.totalorder %s49, %s52
    %p61 = scmp.eq.s32.totalorder %s21, 1
    %p62 = por %p60, %p61
    %p63 = scmp.ne.s32.totalorder %s52, %s53
    %p64 = scmp.eq.s32.totalorder %s21, 0
    %p65 = por %p63, %p64
    %p66 = scmp.ne.s32.totalorder %s52, %s53
    %p67 = scmp.eq.s32.totalorder %s22, 1
    %p68 = por %p66, %p67
    %p70 = scmp.ne.s32.totalorder %s53, %s69
    %p71 = scmp.eq.s32.totalorder %s22, 0
    %p72 = por %p70, %p71
    %s73 = ssub.s32 %s23, %s42
    %s74 = ssub.s32 %s24, %s38
    %s75 = sor.u32 %s73, %s74
    %p76 = scmp.eq.s32.totalorder %s75, 0
    %s78 = sadd.s32 %s77, 1
    %s79 = scalar_select %p76, %s77, %s78
    %p82 = pneg %p76
    %p83 = scmp.eq.s32.totalorder %s16, 1
    %p84 = por %p82, %p83
    %p85 = scmp.ne.s32.totalorder %s77, %s80
    %p86 = scmp.eq.s32.totalorder %s16, 0
    %p87 = por %p85, %p86
    %p88 = scmp.ne.s32.totalorder %s77, %s80
    %p89 = scmp.eq.s32.totalorder %s21, 1
    %p90 = por %p88, %p89
    %p91 = scmp.ne.s32.totalorder %s80, %s81
    %p92 = scmp.eq.s32.totalorder %s21, 0
    %p93 = por %p91, %p92
    %p94 = scmp.ne.s32.totalorder %s80, %s81
    %p95 = scmp.eq.s32.totalorder %s22, 1
    %p96 = por %p94, %p95
    %p98 = scmp.ne.s32.totalorder %s81, %s97
    %p99 = scmp.eq.s32.totalorder %s22, 0
    %p100 = por %p98, %p99
    %s101 = ssub.s32 %s23, %s42
    %s102 = ssub.s32 %s24, %s38
    %s103 = sor.u32 %s101, %s102
    %p104 = scmp.eq.s32.totalorder %s103, 0
    %s106 = sadd.s32 %s105, 1
    %s107 = scalar_select %p104, %s105, %s106
    %p110 = pneg %p104
    %p111 = scmp.eq.s32.totalorder %s16, 1
    %p112 = por %p110, %p111
    %p113 = scmp.ne.s32.totalorder %s105, %s108
    %p114 = scmp.eq.s32.totalorder %s16, 0
    %p115 = por %p113, %p114
    %p116 = scmp.ne.s32.totalorder %s105, %s108
    %p117 = scmp.eq.s32.totalorder %s21, 1
    %p118 = por %p116, %p117
    %p119 = scmp.ne.s32.totalorder %s108, %s109
    %p120 = scmp.eq.s32.totalorder %s21, 0
    %p121 = por %p119, %p120
    %p122 = scmp.ne.s32.totalorder %s108, %s109
    %p123 = scmp.eq.s32.totalorder %s22, 1
    %p124 = por %p122, %p123
    %p126 = scmp.ne.s32.totalorder %s109, %s125
    %p127 = scmp.eq.s32.totalorder %s22, 0
    %p128 = por %p126, %p127
    %s129 = ssub.s32 %s23, %s42
    %s130 = ssub.s32 %s24, %s38
    %s131 = sor.u32 %s129, %s130
    %p132 = scmp.eq.s32.totalorder %s131, 0
    %s134 = sadd.s32 %s133, 1
    %s135 = scalar_select %p132, %s133, %s134
    %p138 = pneg %p132
    %p139 = scmp.eq.s32.totalorder %s16, 1
    %p140 = por %p138, %p139
    %p141 = scmp.ne.s32.totalorder %s133, %s136
    %p142 = scmp.eq.s32.totalorder %s16, 0
    %p143 = por %p141, %p142
    %p144 = scmp.ne.s32.totalorder %s133, %s136
    %p145 = scmp.eq.s32.totalorder %s21, 1
    %p146 = por %p144, %p145
    %p147 = scmp.ne.s32.totalorder %s136, %s137
    %p148 = scmp.eq.s32.totalorder %s21, 0
    %p149 = por %p147, %p148
    %p150 = scmp.ne.s32.totalorder %s136, %s137
    %p151 = scmp.eq.s32.totalorder %s22, 1
    %p152 = por %p150, %p151
    %p154 = scmp.ne.s32.totalorder %s137, %s153
    %p155 = scmp.eq.s32.totalorder %s22, 0
    %p156 = por %p154, %p155
    %p157 = scmp.le.s32.totalorder 1, %s16
    %p158 = scmp.lt.s32.totalorder %s16, 3
    %p159 = pnand %p157, %p158
    %p160 = pneg %p159
    // Predicated region
    $region9: #{tpu_custom_call.1} parent=5 // pred_check
      _
    $region10: #{tpu_custom_call.1} parent=5 // pred_check_branch
      %162 = sbr.rel (%p159) target = $region12
    $region11: #{tpu_custom_call.1} parent=5 // pred_region
      %s163 = ssub.s32 %s16, 1
    $region12: #{tpu_custom_call.1} parent=5 // pred_fallthru
      _
    %p164 = scmp.lt.s32.totalorder %s16, 2
    // Predicated region
    $region13: #{tpu_custom_call.1} parent=5 // pred_check
      %p165 = pneg %p164
    $region14: #{tpu_custom_call.1} parent=5 // pred_check_branch
      %167 = sbr.rel (%p165) target = $region16
    $region15: #{tpu_custom_call.1} parent=5 // pred_region
      // Predicated region
      $region17: #{tpu_custom_call.1} parent=15 // pred_check
        %p168 = pneg %p59
      $region18: #{tpu_custom_call.1} parent=15 // pred_check_branch
        %170 = sbr.rel (%p168) target = $region20
      $region19: #{tpu_custom_call.1} parent=15 // pred_region
        %p171 = scmp.lt.s32.totalorder %s23, 1
        %s172 = scalar_select %p171, %s23, 1
        %p173 = scmp.lt.s32.totalorder %s24, 0
        %s174 = scalar_select %p173, %s24, 0
        %p175 = scmp.lt.s32.totalorder %s25, 0
        %s176 = scalar_select %p175, %s25, 0
        %s177 = sadd.s32 %s176, %s174
        %s178 = sadd.s32 %s177, %s172
        %s179 = smul.addr %s178, 8
        %s180 = scalar_lea.vmem %s1, %s179
      $region20: #{tpu_custom_call.1} parent=15 // pred_fallthru
        _
      // Predicated region
      $region21: #{tpu_custom_call.1} parent=15 // pred_check
        %p181 = pneg %p87
      $region22: #{tpu_custom_call.1} parent=15 // pred_check_branch
        %183 = sbr.rel (%p181) target = $region24
      $region23: #{tpu_custom_call.1} parent=15 // pred_region
        %p184 = scmp.lt.s32.totalorder %s23, 1
        %s185 = scalar_select %p184, %s23, 1
        %p186 = scmp.lt.s32.totalorder %s24, 0
        %s187 = scalar_select %p186, %s24, 0
        %s188 = sadd.s32 %s187, %s185
        %s189 = smul.addr %s188, 8
        %s190 = scalar_lea.vmem %s2, %s189
      $region24: #{tpu_custom_call.1} parent=15 // pred_fallthru
        _
      // Predicated region
      $region25: #{tpu_custom_call.1} parent=15 // pred_check
        %p191 = pneg %p115
      $region26: #{tpu_custom_call.1} parent=15 // pred_check_branch
        %193 = sbr.rel (%p191) target = $region28
      $region27: #{tpu_custom_call.1} parent=15 // pred_region
        %p194 = scmp.lt.s32.totalorder %s23, 1
        %s195 = scalar_select %p194, %s23, 1
        %p196 = scmp.lt.s32.totalorder %s24, 0
        %s197 = scalar_select %p196, %s24, 0
        %s198 = sadd.s32 %s197, %s195
        %s199 = smul.addr %s198, 8
        %s200 = scalar_lea.vmem %s3, %s199
      $region28: #{tpu_custom_call.1} parent=15 // pred_fallthru
        _
    $region16: #{tpu_custom_call.1} parent=5 // pred_fallthru
      _
    %p201 = scmp.le.s32.totalorder 1, %s16
    %p202 = scmp.lt.s32.totalorder %s16, 3
    %p203 = pnand %p201, %p202
    %p204 = pneg %p203
    // Predicated region
    $region29: #{tpu_custom_call.1} parent=5 // pred_check
      _
    $region30: #{tpu_custom_call.1} parent=5 // pred_check_branch
      %206 = sbr.rel (%p203) target = $region32
    $region31: #{tpu_custom_call.1} parent=5 // pred_region
      %s207 = ssub.s32 %s16, 1
      %p208 = scmp.lt.s32.totalorder %s26, 1
      %s209 = scalar_select %p208, %s26, 1
      %p210 = scmp.lt.s32.totalorder %s27, 0
      %s211 = scalar_select %p210, %s27, 0
      %p212 = scmp.lt.s32.totalorder %s28, 0
      %s213 = scalar_select %p212, %s28, 0
      %s214 = sadd.s32 %s213, %s211
      %s215 = sadd.s32 %s214, %s209
      %s216 = smul.addr %s215, 8
      %s217 = scalar_lea.vmem %s1, %s216
      %p218 = pneg %p65
      %p219 = pneg %p62
      %p220 = scmp.lt.s32.totalorder %s26, 1
      %s221 = scalar_select %p220, %s26, 1
      %p222 = scmp.lt.s32.totalorder %s27, 0
      %s223 = scalar_select %p222, %s27, 0
      %s224 = sadd.s32 %s223, %s221
      %s225 = smul.addr %s224, 8
      %s226 = scalar_lea.vmem %s2, %s225
      %p227 = pneg %p93
      %p228 = pneg %p90
      %p229 = scmp.lt.s32.totalorder %s26, 1
      %s230 = scalar_select %p229, %s26, 1
      %p231 = scmp.lt.s32.totalorder %s27, 0
      %s232 = scalar_select %p231, %s27, 0
      %s233 = sadd.s32 %s232, %s230
      %s234 = smul.addr %s233, 8
      %s235 = scalar_lea.vmem %s3, %s234
      %p236 = pneg %p121
      %p237 = pneg %p118
      %p238 = pneg %p149
      %p239 = pneg %p146
      %p240 = scmp.lt.s32.totalorder %s26, 1
      %s241 = scalar_select %p240, %s26, 1
      %p242 = scmp.lt.s32.totalorder %s27, 0
      %s243 = scalar_select %p242, %s27, 0
      %s244 = sadd.s32 %s243, %s241
      %s245 = smul.addr %s244, 8
      %s246 = scalar_lea.vmem %s4, %s245
      %p247 = scmp.lt.s32.totalorder %s26, 1
      %s248 = scalar_select %p247, %s26, 1
      %p249 = scmp.lt.s32.totalorder %s27, 0
      %s250 = scalar_select %p249, %s27, 0
      %p251 = scmp.lt.s32.totalorder %s28, 0
      %s252 = scalar_select %p251, %s28, 0
      %s253 = sadd.s32 %s252, %s250
      %s254 = sadd.s32 %s253, %s248
      %s255 = smul.addr %s254, 8
      %s256 = scalar_lea.vmem %s1, %s255
      %p257 = scmp.lt.s32.totalorder %s26, 1
      %s258 = scalar_select %p257, %s26, 1
      %p259 = scmp.lt.s32.totalorder %s27, 0
      %s260 = scalar_select %p259, %s27, 0
      %s261 = sadd.s32 %s260, %s258
      %s262 = smul.addr %s261, 8
      %s263 = scalar_lea.vmem %s2, %s262
      %p264 = scmp.lt.s32.totalorder %s26, 1
      %s265 = scalar_select %p264, %s26, 1
      %p266 = scmp.lt.s32.totalorder %s27, 0
      %s267 = scalar_select %p266, %s27, 0
      %s268 = sadd.s32 %s267, %s265
      %s269 = smul.addr %s268, 8
      %s270 = scalar_lea.vmem %s3, %s269
      %p271 = scmp.lt.s32.totalorder %s26, 1
      %s272 = scalar_select %p271, %s26, 1
      %p273 = scmp.lt.s32.totalorder %s27, 0
      %s274 = scalar_select %p273, %s27, 0
      %s275 = sadd.s32 %s274, %s272
      %s276 = smul.addr %s275, 8
      %s277 = scalar_lea.vmem %s4, %s276
      %v278 = vld [vmem:[%s256] sm:$0xff]
      %v279 = vld [vmem:[%s263] sm:$0xff]
      %v280 = vld [vmem:[%s270] sm:$0xff]
      %v281 = vlaneseq
      %v282 = vand.u32 %v281, 127
      %s283 = smul.u32 %s28, 32
      %v284 = vstv %s283
      %v285 = vsub.s32 %v279, %v284
      %286 = vset.pattern.permute.xlu0 0
      %287 = vperm.xlu0 %286, %v285
      %v288 = vpop.permute.xlu0 %287
      %vm289 = vcmp.eq.s32.totalorder %v282, %v288
      %v290 = vsel %vm289, %v278, 0.0
      %vm291 = vcmask 261120
      %v292 = vsel %vm291, %v290, 0.0
      %293 = vadd.xlane.f32.xlu0 %v292
      %v294 = vpop.xlane.xlu0 %293
      %s295 = smul.u32 %s27, 8
      %v296 = vlaneseq
      %v297 = vshrl.u32 %v296, 7
      %v298 = vstv %s295
      %v299 = vadd.s32 %v298, %v297
      %s300 = sld [smem:[#allocation3 + %s26]]
      %v301 = vstv %s300
      %vm302 = vcmp.lt.s32.totalorder %v299, %v301
      %v303 = vsub.f32 0.0, %v294
      %v304 = vmul.f32 %v303, %v280
      %v305 = vsel %vm302, %v304, 0.0
      %p306 = scmp.eq.s32.totalorder %s28, 0
      // Predicated region
      $region33: #{tpu_custom_call.1} parent=31 // pred_check
        %p307 = pneg %p306
      $region34: #{tpu_custom_call.1} parent=31 // pred_check_branch
        %309 = sbr.rel (%p307) target = $region36
      $region35: #{tpu_custom_call.1} parent=31 // pred_region
        %vm310 = vcmask 7168
        %311 = vst.msk [vmem:[%s277] sm:$0xff] %vm310, 0.0
      $region36: #{tpu_custom_call.1} parent=31 // pred_fallthru
        _
      %v312 = vld [vmem:[%s277] sm:$0xff]
      %v313 = vadd.f32 %v312, %v305
      %vm314 = vcmask 7168
      %315 = vst.msk [vmem:[%s277] sm:$0xff] %vm314, %v313
      %p316 = scmp.lt.s32.totalorder %s26, 1
      %s317 = scalar_select %p316, %s26, 1
      %p318 = scmp.lt.s32.totalorder %s27, 0
      %s319 = scalar_select %p318, %s27, 0
      %s320 = sadd.s32 %s319, %s317
      %s321 = smul.addr %s320, 8
      %s322 = scalar_lea.vmem %s4, %s321
      // Predicated region
      $region37: #{tpu_custom_call.1} parent=31 // pred_check
        %p323 = pneg %p146
      $region38: #{tpu_custom_call.1} parent=31 // pred_check_branch
        %325 = sbr.rel (%p323) target = $region40
      $region39: #{tpu_custom_call.1} parent=31 // pred_region
        _
      $region40: #{tpu_custom_call.1} parent=31 // pred_fallthru
        _
    $region32: #{tpu_custom_call.1} parent=5 // pred_fallthru
      _
    %p326 = scmp.le.s32.totalorder 2, %s16
    // Predicated region
    $region41: #{tpu_custom_call.1} parent=5 // pred_check
      %p327 = pneg %p326
    $region42: #{tpu_custom_call.1} parent=5 // pred_check_branch
      %329 = sbr.rel (%p327) target = $region44
    $region43: #{tpu_custom_call.1} parent=5 // pred_region
      %s330 = ssub.s32 %s16, 2
      // Predicated region
      $region45: #{tpu_custom_call.1} parent=43 // pred_check
        %p331 = pneg %p152
      $region46: #{tpu_custom_call.1} parent=43 // pred_check_branch
        %333 = sbr.rel (%p331) target = $region48
      $region47: #{tpu_custom_call.1} parent=43 // pred_region
        %p334 = scmp.lt.s32.totalorder %s29, 1
        %s335 = scalar_select %p334, %s29, 1
        %p336 = scmp.lt.s32.totalorder %s30, 0
        %s337 = scalar_select %p336, %s30, 0
        %s338 = sadd.s32 %s337, %s335
        %s339 = smul.addr %s338, 8
        %s340 = scalar_lea.vmem %s4, %s339
      $region48: #{tpu_custom_call.1} parent=43 // pred_fallthru
        _
    $region44: #{tpu_custom_call.1} parent=5 // pred_fallthru
      _
  $region6: #{tpu_custom_call.1} parent=0 // loop_footer
    %s20 = sadd.s32 1, %s16
  $region7: #{tpu_custom_call.1} parent=0 // loop_footer_branch
    %15 = sbr.rel target = $region3
  $region8: #{tpu_custom_call.1} parent=0 // loop_exit
    _

</llo_original>
